<compile_context>
chip_gen: v6e
topology: v6e:2x2x1
jax: 0.10.0
libtpu: 0.0.40
codegen_flags: <defaults>
</compile_context>

<pallas_src>
import functools
import math

import jax
import jax.numpy as jnp
from jax.experimental import pallas as pl
from jax.experimental.pallas import tpu as pltpu


def _round_up(v, m):
    return (v + m - 1) // m * m


def _ffn_kernel(x_ref, w1_ref, b1_ref, w2_ref, b2_ref, o_ref, acc_ref, *,
                compute_dtype):
    """One (row-block, hidden-chunk) step of the position-wise FFN.

    x_ref : (Tm, Dp)   input rows              (resident across hidden chunks)
    w1_ref: (Dp, Tk)   dense1 weight chunk
    b1_ref: (1,  Tk)   dense1 bias chunk
    w2_ref: (Tk, Op)   dense2 weight chunk
    b2_ref: (1,  Op)   dense2 bias
    o_ref : (Tm, Op)   output rows             (resident across hidden chunks)
    acc_ref:(Tm, Op)   f32 accumulator scratch
    """
    k = pl.program_id(1)

    @pl.when(k == 0)
    def _init():
        acc_ref[...] = jnp.zeros_like(acc_ref)

    # dense1 chunk on the MXU (bf16 operands, f32 accumulate), bias + ReLU on
    # the VPU in f32, then back to compute_dtype for the second MXU pass.
    x = x_ref[...].astype(compute_dtype)
    w1 = w1_ref[...].astype(compute_dtype)
    h = jnp.dot(x, w1, preferred_element_type=jnp.float32) + b1_ref[...]
    h = jnp.maximum(h, 0.0).astype(compute_dtype)

    w2 = w2_ref[...].astype(compute_dtype)
    acc_ref[...] += jnp.dot(h, w2, preferred_element_type=jnp.float32)

    @pl.when(k == pl.num_programs(1) - 1)
    def _finalize():
        o_ref[...] = (acc_ref[...] + b2_ref[...]).astype(o_ref.dtype)


def _choose_row_tile(n_rows, block_rows, dtype):
    """Row tile: big when N is big, but split into >=2 blocks when possible
    (v7x megacore), and always a dense-sublane multiple for the I/O dtype."""
    sub = max(8, 32 // jnp.dtype(dtype).itemsize)   # 8 (f32) / 16 (bf16) / 32 (i8)
    if n_rows >= 2 * block_rows:
        return block_rows
    tm = _round_up(pl.cdiv(n_rows, 2), sub)
    return max(sub, min(block_rows, tm))


def _choose_hidden_chunk(mp, block_hidden):
    """Largest 128-multiple divisor of mp that is <= block_hidden (>=128)."""
    cap = max(128, _round_up(block_hidden, 128))
    if mp <= cap:
        return mp
    best = 128
    c = 256
    while c <= cap:
        if mp % c == 0:
            best = c
        c += 128
    return best


def position_wise_ffn(x, w1, b1, w2, b2, *, block_rows=512, block_hidden=512,
                      compute_dtype=jnp.bfloat16):
    """Y = relu(X @ w1 + b1) @ w2 + b2 over the last axis of X.

    x : (..., D_in)
    w1: (D_in, M), b1: (M,)      (= torch dense1.weight.T / dense1.bias)
    w2: (M, D_out), b2: (D_out,) (= torch dense2.weight.T / dense2.bias)
    """
    lead_shape = x.shape[:-1]
    d_in = x.shape[-1]
    m_hidden = w1.shape[1]
    d_out = w2.shape[1]

    n_rows = math.prod(lead_shape) if lead_shape else 1
    x2 = x.reshape(n_rows, d_in)

    # Lane-dense feature dims. Pads are conditional no-ops: for 128-aligned
    # transformer shapes nothing is copied. Zero padding is inert for this FFN.
    dp = _round_up(d_in, 128)
    mp = _round_up(m_hidden, 128)
    op = _round_up(d_out, 128)

    if dp != d_in:
        x2 = jnp.pad(x2, ((0, 0), (0, dp - d_in)))
    if (dp, mp) != w1.shape:
        w1 = jnp.pad(w1, ((0, dp - d_in), (0, mp - m_hidden)))
    b1 = b1.reshape(1, -1)
    if mp != m_hidden:
        b1 = jnp.pad(b1, ((0, 0), (0, mp - m_hidden)))
    if (mp, op) != w2.shape:
        w2 = jnp.pad(w2, ((0, mp - m_hidden), (0, op - d_out)))
    b2 = b2.reshape(1, -1)
    if op != d_out:
        b2 = jnp.pad(b2, ((0, 0), (0, op - d_out)))

    tm = _choose_row_tile(n_rows, block_rows, x.dtype)
    tk = _choose_hidden_chunk(mp, block_hidden)   # divides mp exactly
    grid = (pl.cdiv(n_rows, tm), mp // tk)        # rows ragged-ok; M exact

    # Explicit VMEM budget (double-buffered tiles + f32 accumulator), capped
    # so it is safe on v7x's 64 MiB physical VMEM.
    est = (2 * tm * dp * x2.dtype.itemsize                 # x tile
           + 2 * (dp * tk + tk) * w1.dtype.itemsize        # w1 + b1 chunk
           + 2 * tk * op * w2.dtype.itemsize               # w2 chunk
           + 2 * op * b2.dtype.itemsize                    # b2
           + 2 * tm * op * x.dtype.itemsize                # out tile
           + tm * op * 4)                                  # f32 accumulator
    vmem_limit = int(min(max(2 * est, 16 * 2**20), 64 * 2**20))

    kernel = functools.partial(_ffn_kernel, compute_dtype=compute_dtype)

    out = pl.pallas_call(
        kernel,
        out_shape=jax.ShapeDtypeStruct((n_rows, op), x.dtype),
        grid=grid,
        in_specs=[
            pl.BlockSpec((tm, dp), lambda i, k: (i, 0)),   # x rows (resident over k)
            pl.BlockSpec((dp, tk), lambda i, k: (0, k)),   # w1 chunk (streamed)
            pl.BlockSpec((1, tk), lambda i, k: (0, k)),    # b1 chunk
            pl.BlockSpec((tk, op), lambda i, k: (k, 0)),   # w2 chunk (streamed)
            pl.BlockSpec((1, op), lambda i, k: (0, 0)),    # b2 (tiny, constant)
        ],
        out_specs=pl.BlockSpec((tm, op), lambda i, k: (i, 0)),
        scratch_shapes=[pltpu.VMEM((tm, op), jnp.float32)],
        compiler_params=pltpu.CompilerParams(
            dimension_semantics=("parallel", "arbitrary"),
            vmem_limit_bytes=vmem_limit,
        ),
    )(x2, w1, b1, w2, b2)

    if op != d_out:
        out = out[:, :d_out]
    return out.reshape(*lead_shape, d_out)


def position_wise_ffn_ref(x, w1, b1, w2, b2):
    """Plain-JAX reference mirroring the PyTorch forward (f32)."""
    h = jnp.maximum(x @ w1 + b1, 0.0)
    return h @ w2 + b2


if __name__ == "__main__":
    # Small shapes consistent with the module: batch=2, seq=8,
    # ffn_num_input=32, ffn_num_hiddens=64, ffn_num_outputs=32.
    B, L, D_IN, M_HID, D_OUT = 2, 8, 32, 64, 32

    keys = jax.random.split(jax.random.PRNGKey(0), 5)
    init = lambda k, shape: jax.random.normal(k, shape, jnp.float32) * 0.1

    x = jax.random.normal(keys[0], (B, L, D_IN), jnp.float32)
    w1 = init(keys[1], (D_IN, M_HID))       # = torch dense1.weight.T
    b1 = init(keys[2], (M_HID,))
    w2 = init(keys[3], (M_HID, D_OUT))      # = torch dense2.weight.T
    b2 = init(keys[4], (D_OUT,))

    ref = position_wise_ffn_ref(x, w1, b1, w2, b2)

    # Default path: bf16 MXU operands, f32 accumulation (looser tolerance).
    out_bf16 = jax.block_until_ready(position_wise_ffn(x, w1, b1, w2, b2))
    assert out_bf16.shape == (B, L, D_OUT), out_bf16.shape
    assert jnp.allclose(out_bf16, ref, atol=5e-2, rtol=5e-2), \
        "bf16-compute mismatch vs. JAX reference"

    # Full-f32 path matches the PyTorch/JAX reference tightly.
    out_f32 = jax.block_until_ready(
        position_wise_ffn(x, w1, b1, w2, b2, compute_dtype=jnp.float32))
    assert out_f32.shape == (B, L, D_OUT), out_f32.shape
    assert jnp.allclose(out_f32, ref, atol=1e-4, rtol=1e-4), \
        "f32-compute mismatch vs. JAX reference"

    print("KERNEL_OK")
</pallas_src>

<mosaic_0001>
module attributes {stable_mosaic.version = 11 : i64} {
  func.func @_ffn_kernel(%arg0: i32, %arg1: i32, %arg2: memref<8x128xf32, #tpu.memory_space<vmem>>, %arg3: memref<128x128xf32, #tpu.memory_space<vmem>>, %arg4: memref<1x128xf32, #tpu.memory_space<vmem>>, %arg5: memref<128x128xf32, #tpu.memory_space<vmem>>, %arg6: memref<1x128xf32, #tpu.memory_space<vmem>>, %arg7: memref<8x128xf32, #tpu.memory_space<vmem>>, %arg8: memref<8x128xf32, #tpu.memory_space<vmem>>) attributes {dimension_semantics = [#tpu.dimension_semantics<parallel>, #tpu.dimension_semantics<arbitrary>], iteration_bounds = array<i64: 2, 1>, scalar_prefetch = 0 : i64, scratch_operands = 1 : i64, tpu.core_type = #tpu.core_type<tc>, window_params = [{transform_indices = @transform_0, window_bounds = array<i64: 8, 128>}, {transform_indices = @transform_1, window_bounds = array<i64: 128, 128>}, {transform_indices = @transform_2, window_bounds = array<i64: 1, 128>}, {transform_indices = @transform_3, window_bounds = array<i64: 128, 128>}, {pipeline_mode = #tpu.pipeline_mode<synchronous>, transform_indices = @transform_4, window_bounds = array<i64: 1, 128>}, {transform_indices = @transform_5, window_bounds = array<i64: 8, 128>}]} {
    %c0_i32 = arith.constant 0 : i32
    %0 = arith.cmpi eq, %arg1, %c0_i32 : i32
    %1 = arith.extui %0 : i1 to i32
    %c0_i32_0 = arith.constant 0 : i32
    %2 = arith.cmpi ne, %1, %c0_i32_0 : i32
    scf.if %2 {
      %cst_16 = arith.constant 0.000000e+00 : f32
      %23 = vector.broadcast %cst_16 : f32 to vector<8x128xf32>
      %c0_17 = arith.constant 0 : index
      %c0_18 = arith.constant 0 : index
      %24 = vector.load %arg8[%c0_17, %c0_18] : memref<8x128xf32, #tpu.memory_space<vmem>>, vector<8x128xf32>
      tpu.vector_store %arg8[%c0_17, %c0_18], %23 {strides = array<i32>} : memref<8x128xf32, #tpu.memory_space<vmem>>, vector<8x128xf32>,
    } else {
    }
    %c0 = arith.constant 0 : index
    %c0_1 = arith.constant 0 : index
    %3 = vector.load %arg2[%c0, %c0_1] : memref<8x128xf32, #tpu.memory_space<vmem>>, vector<8x128xf32>
    %4 = arith.truncf %3 : vector<8x128xf32> to vector<8x128xbf16>
    %c0_2 = arith.constant 0 : index
    %c0_3 = arith.constant 0 : index
    %5 = vector.load %arg3[%c0_2, %c0_3] : memref<128x128xf32, #tpu.memory_space<vmem>>, vector<128x128xf32>
    %6 = arith.truncf %5 : vector<128x128xf32> to vector<128x128xbf16>
    %cst = arith.constant dense<0.000000e+00> : vector<8x128xf32>
    %7 = tpu.matmul %4, %6, %cst {dimension_numbers = #tpu.dot_dimension_numbers<[1], [0], [0], [1], [0, 0, 1, 1], [], []>} : vector<8x128xbf16>, vector<128x128xbf16>, vector<8x128xf32> -> vector<8x128xf32>
    %c0_4 = arith.constant 0 : index
    %c0_5 = arith.constant 0 : index
    %8 = vector.load %arg4[%c0_4, %c0_5] : memref<1x128xf32, #tpu.memory_space<vmem>>, vector<1x128xf32>
    %9 = vector.broadcast %8 : vector<1x128xf32> to vector<8x128xf32>
    %10 = arith.addf %7, %9 : vector<8x128xf32>
    %cst_6 = arith.constant 0.000000e+00 : f32
    %11 = vector.broadcast %cst_6 : f32 to vector<8x128xf32>
    %12 = arith.maximumf %10, %11 : vector<8x128xf32>
    %13 = arith.truncf %12 : vector<8x128xf32> to vector<8x128xbf16>
    %c0_7 = arith.constant 0 : index
    %c0_8 = arith.constant 0 : index
    %14 = vector.load %arg5[%c0_7, %c0_8] : memref<128x128xf32, #tpu.memory_space<vmem>>, vector<128x128xf32>
    %15 = arith.truncf %14 : vector<128x128xf32> to vector<128x128xbf16>
    %c0_9 = arith.constant 0 : index
    %c0_10 = arith.constant 0 : index
    %16 = vector.load %arg8[%c0_9, %c0_10] : memref<8x128xf32, #tpu.memory_space<vmem>>, vector<8x128xf32>
    %cst_11 = arith.constant dense<0.000000e+00> : vector<8x128xf32>
    %17 = tpu.matmul %13, %15, %cst_11 {dimension_numbers = #tpu.dot_dimension_numbers<[1], [0], [0], [1], [0, 0, 1, 1], [], []>} : vector<8x128xbf16>, vector<128x128xbf16>, vector<8x128xf32> -> vector<8x128xf32>
    %18 = arith.addf %16, %17 : vector<8x128xf32>
    %c0_12 = arith.constant 0 : index
    %c0_13 = arith.constant 0 : index
    %19 = vector.load %arg8[%c0_12, %c0_13] : memref<8x128xf32, #tpu.memory_space<vmem>>, vector<8x128xf32>
    tpu.vector_store %arg8[%c0_12, %c0_13], %18 {strides = array<i32>} : memref<8x128xf32, #tpu.memory_space<vmem>>, vector<8x128xf32>,
    %c0_i32_14 = arith.constant 0 : i32
    %20 = arith.cmpi eq, %arg1, %c0_i32_14 : i32
    %21 = arith.extui %20 : i1 to i32
    %c0_i32_15 = arith.constant 0 : i32
    %22 = arith.cmpi ne, %21, %c0_i32_15 : i32
    scf.if %22 {
      %c0_16 = arith.constant 0 : index
      %c0_17 = arith.constant 0 : index
      %23 = vector.load %arg8[%c0_16, %c0_17] : memref<8x128xf32, #tpu.memory_space<vmem>>, vector<8x128xf32>
      %c0_18 = arith.constant 0 : index
      %c0_19 = arith.constant 0 : index
      %24 = vector.load %arg6[%c0_18, %c0_19] : memref<1x128xf32, #tpu.memory_space<vmem>>, vector<1x128xf32>
      %25 = vector.broadcast %24 : vector<1x128xf32> to vector<8x128xf32>
      %26 = arith.addf %23, %25 : vector<8x128xf32>
      %c0_20 = arith.constant 0 : index
      %c0_21 = arith.constant 0 : index
      %27 = vector.load %arg7[%c0_20, %c0_21] : memref<8x128xf32, #tpu.memory_space<vmem>>, vector<8x128xf32>
      tpu.vector_store %arg7[%c0_20, %c0_21], %26 {strides = array<i32>} : memref<8x128xf32, #tpu.memory_space<vmem>>, vector<8x128xf32>,
    } else {
    }
    return
  }
  func.func @transform_0(%arg0: i32, %arg1: i32) -> (i32, i32) {
    %c0_i32 = arith.constant 0 : i32
    %c0_i32_0 = arith.constant 0 : i32
    return %arg0, %c0_i32 : i32, i32
  }
  func.func @transform_1(%arg0: i32, %arg1: i32) -> (i32, i32) {
    %c0_i32 = arith.constant 0 : i32
    %c0_i32_0 = arith.constant 0 : i32
    return %c0_i32, %arg1 : i32, i32
  }
  func.func @transform_2(%arg0: i32, %arg1: i32) -> (i32, i32) {
    %c0_i32 = arith.constant 0 : i32
    %c0_i32_0 = arith.constant 0 : i32
    return %c0_i32, %arg1 : i32, i32
  }
  func.func @transform_3(%arg0: i32, %arg1: i32) -> (i32, i32) {
    %c0_i32 = arith.constant 0 : i32
    %c0_i32_0 = arith.constant 0 : i32
    return %arg1, %c0_i32 : i32, i32
  }
  func.func @transform_4(%arg0: i32, %arg1: i32) -> (i32, i32) {
    %c0_i32 = arith.constant 0 : i32
    %c0_i32_0 = arith.constant 0 : i32
    %c0_i32_1 = arith.constant 0 : i32
    return %c0_i32, %c0_i32_0 : i32, i32
  }
  func.func @transform_5(%arg0: i32, %arg1: i32) -> (i32, i32) {
    %c0_i32 = arith.constant 0 : i32
    %c0_i32_0 = arith.constant 0 : i32
    return %arg0, %c0_i32 : i32, i32
  }
}

</mosaic_0001>

<llo_original>
// kernel: tpu_custom_call.1
$region0: #{tpu_custom_call.1}
  #allocation0 [shape = 'u32[]', space=smem, size = 0x4, offset = 0x4, fixed_abs, tag = 'smem constant byte address 0x4 - core index']
  #allocation1 [shape = 'u32[144,128]{1,0:T(1,128)}', space=vmem, size = 0x12000, scoped, tag = 'internal scratch']
  #allocation2 [shape = 'f32[8,128]{1,0:T(8,128)}', space=vmem, size = 0x1000, scoped, tag = 'scratch operand']
  %s0 = inlined_call_operand.hbm [shape: f32[16,128], index: 0, kind: input, shape index: {}]
  %s1 = inlined_call_operand.hbm [shape: f32[128,128], index: 1, kind: input, shape index: {}]
  %s2 = inlined_call_operand.vmem [shape: f32[1,128], index: 2, kind: input, shape index: {}]
  %s3 = inlined_call_operand.hbm [shape: f32[128,128], index: 3, kind: input, shape index: {}]
  %s4 = inlined_call_operand.vmem [shape: f32[1,128], index: 4, kind: input, shape index: {}]
  %s5 = inlined_call_operand.hbm [shape: f32[16,128], index: 5, kind: output, shape index: {}]
  %s6 = sld [smem:[#allocation0]]
  $region73: #{tpu_custom_call.1} parent=0
    _
  %s8 = ssub.s32 1, %s6
  %s9 = scalar_select 0, %s8, %s6
  $region1: #{tpu_custom_call.1} parent=0
    #allocation3 [shape = 'u8[8192]{0}', space=vmem, size = 0x2000, scoped, tag = 'input window, operand 0']
    #allocation4 [shape = 's32[2]{0}', space=sflag, size = 0x8, scoped, tag = 'scoped memory for tpu_custom_call.1']
    #allocation5 [shape = 's32[2]{0}', space=sflag, size = 0x8, scoped, tag = 'scoped memory for tpu_custom_call.1']
    #allocation6 [shape = 'u8[65536]{0}', space=vmem, size = 0x10000, scoped, tag = 'input window, operand 1, single buffered']
    #allocation7 [shape = 's32[1]{0}', space=sflag, size = 0x4, scoped, tag = 'scoped memory for tpu_custom_call.1']
    #allocation8 [shape = 'u8[65536]{0}', space=vmem, size = 0x10000, scoped, tag = 'input window, operand 3, single buffered']
    #allocation9 [shape = 'u8[8192]{0}', space=vmem, size = 0x2000, scoped, tag = 'output window, operand 0']
    %10 = vsyncpa [#allocation4], 0
    %s11 = scalar_lea.sflag [#allocation4], 1
    %12 = vsyncpa %s11, 0
    %13 = vsyncpa [#allocation7], 0
    %14 = vsyncpa [#allocation5], 0
    %s15 = scalar_lea.sflag [#allocation5], 1
    %16 = vsyncpa %s15, 0
    loop: start=0, step=1, limit=4
    $region2: #{tpu_custom_call.1} parent=1 // loop_pre_header
      _
    $region3: #{tpu_custom_call.1} parent=1 // loop_header
      %s18 = sphi 0, %s22
      %p19 = scmp.ge.s32.totalorder %s18, 4
      %s25 = sphi 0, %s37
      %s26 = sphi 0, %s33
      %s27 = sphi 0, %s25
      %s28 = sphi 0, %s26
      %s29 = sphi 0, %s27
      %s30 = sphi 0, %s28
      %s40 = sphi 0, %s42
      %s43 = sphi 0, %s40
      %s44 = sphi 0, %s43
      %s60 = sphi 0, %s44
      %s66 = sphi 0, %s68
      %s69 = sphi 0, %s66
      %s70 = sphi 0, %s69
      %s86 = sphi 0, %s70
      %s92 = sphi 0, %s94
      %s95 = sphi 0, %s92
      %s96 = sphi 0, %s95
      %s112 = sphi 0, %s96
      %s118 = sphi 0, %s120
      %s121 = sphi 0, %s118
      %s122 = sphi 0, %s121
      %s138 = sphi 0, %s122
      %s142 = sphi 0, %s142
      %s144 = sphi 0, %s142
      %s145 = sphi 0, %s144
      %s159 = sphi 0, %s145
      %s165 = sphi 0, %s167
      %s168 = sphi 0, %s165
      %s169 = sphi 0, %s168
      %s185 = sphi 0, %s169
    $region4: #{tpu_custom_call.1} parent=1 // loop_header_branch
      %21 = sbr.rel (%p19) target = $region8
    $region5: #{tpu_custom_call.1} parent=1 // loop_body
      %s23 = ssub.s32 %s18, 1
      %s24 = ssub.s32 %s18, 2
      %s31 = sadd.s32 1, %s26
      %p32 = scmp.ge.s32.totalorder %s31, 1
      %s33 = scalar_select %p32, 0, %s31
      %s34 = sadd.s32 1, %s25
      %s35 = scalar_select %p32, %s34, %s25
      %p36 = scmp.ge.s32.totalorder %s35, 2
      %s37 = scalar_select %p36, 0, %s35
      %s38 = ssub.s32 %s25, %s37
      %p39 = scmp.eq.s32.totalorder %s38, 0
      %s41 = sadd.s32 %s40, 1
      %s42 = scalar_select %p39, %s40, %s41
      %p45 = pneg %p39
      %p46 = scmp.eq.s32.totalorder %s18, 1
      %p47 = por %p45, %p46
      %p48 = scmp.ne.s32.totalorder %s40, %s43
      %p49 = scmp.eq.s32.totalorder %s18, 0
      %p50 = por %p48, %p49
      %p51 = scmp.ne.s32.totalorder %s40, %s43
      %p52 = scmp.eq.s32.totalorder %s23, 1
      %p53 = por %p51, %p52
      %p54 = scmp.ne.s32.totalorder %s43, %s44
      %p55 = scmp.eq.s32.totalorder %s23, 0
      %p56 = por %p54, %p55
      %p57 = scmp.ne.s32.totalorder %s43, %s44
      %p58 = scmp.eq.s32.totalorder %s24, 1
      %p59 = por %p57, %p58
      %p61 = scmp.ne.s32.totalorder %s44, %s60
      %p62 = scmp.eq.s32.totalorder %s24, 0
      %p63 = por %p61, %p62
      %s64 = ssub.s32 %s26, %s33
      %p65 = scmp.eq.s32.totalorder %s64, 0
      %s67 = sadd.s32 %s66, 1
      %s68 = scalar_select %p65, %s66, %s67
      %p71 = pneg %p65
      %p72 = scmp.eq.s32.totalorder %s18, 1
      %p73 = por %p71, %p72
      %p74 = scmp.ne.s32.totalorder %s66, %s69
      %p75 = scmp.eq.s32.totalorder %s18, 0
      %p76 = por %p74, %p75
      %p77 = scmp.ne.s32.totalorder %s66, %s69
      %p78 = scmp.eq.s32.totalorder %s23, 1
      %p79 = por %p77, %p78
      %p80 = scmp.ne.s32.totalorder %s69, %s70
      %p81 = scmp.eq.s32.totalorder %s23, 0
      %p82 = por %p80, %p81
      %p83 = scmp.ne.s32.totalorder %s69, %s70
      %p84 = scmp.eq.s32.totalorder %s24, 1
      %p85 = por %p83, %p84
      %p87 = scmp.ne.s32.totalorder %s70, %s86
      %p88 = scmp.eq.s32.totalorder %s24, 0
      %p89 = por %p87, %p88
      %s90 = ssub.s32 %s26, %s33
      %p91 = scmp.eq.s32.totalorder %s90, 0
      %s93 = sadd.s32 %s92, 1
      %s94 = scalar_select %p91, %s92, %s93
      %p97 = pneg %p91
      %p98 = scmp.eq.s32.totalorder %s18, 1
      %p99 = por %p97, %p98
      %p100 = scmp.ne.s32.totalorder %s92, %s95
      %p101 = scmp.eq.s32.totalorder %s18, 0
      %p102 = por %p100, %p101
      %p103 = scmp.ne.s32.totalorder %s92, %s95
      %p104 = scmp.eq.s32.totalorder %s23, 1
      %p105 = por %p103, %p104
      %p106 = scmp.ne.s32.totalorder %s95, %s96
      %p107 = scmp.eq.s32.totalorder %s23, 0
      %p108 = por %p106, %p107
      %p109 = scmp.ne.s32.totalorder %s95, %s96
      %p110 = scmp.eq.s32.totalorder %s24, 1
      %p111 = por %p109, %p110
      %p113 = scmp.ne.s32.totalorder %s96, %s112
      %p114 = scmp.eq.s32.totalorder %s24, 0
      %p115 = por %p113, %p114
      %s116 = ssub.s32 %s26, %s33
      %p117 = scmp.eq.s32.totalorder %s116, 0
      %s119 = sadd.s32 %s118, 1
      %s120 = scalar_select %p117, %s118, %s119
      %p123 = pneg %p117
      %p124 = scmp.eq.s32.totalorder %s18, 1
      %p125 = por %p123, %p124
      %p126 = scmp.ne.s32.totalorder %s118, %s121
      %p127 = scmp.eq.s32.totalorder %s18, 0
      %p128 = por %p126, %p127
      %p129 = scmp.ne.s32.totalorder %s118, %s121
      %p130 = scmp.eq.s32.totalorder %s23, 1
      %p131 = por %p129, %p130
      %p132 = scmp.ne.s32.totalorder %s121, %s122
      %p133 = scmp.eq.s32.totalorder %s23, 0
      %p134 = por %p132, %p133
      %p135 = scmp.ne.s32.totalorder %s121, %s122
      %p136 = scmp.eq.s32.totalorder %s24, 1
      %p137 = por %p135, %p136
      %p139 = scmp.ne.s32.totalorder %s122, %s138
      %p140 = scmp.eq.s32.totalorder %s24, 0
      %p141 = por %p139, %p140
      %s143 = sadd.s32 %s142, 1
      %p146 = scmp.eq.s32.totalorder %s18, 1
      %p147 = scmp.ne.s32.totalorder %s142, %s144
      %p148 = scmp.eq.s32.totalorder %s18, 0
      %p149 = por %p147, %p148
      %p150 = scmp.ne.s32.totalorder %s142, %s144
      %p151 = scmp.eq.s32.totalorder %s23, 1
      %p152 = por %p150, %p151
      %p153 = scmp.ne.s32.totalorder %s144, %s145
      %p154 = scmp.eq.s32.totalorder %s23, 0
      %p155 = por %p153, %p154
      %p156 = scmp.ne.s32.totalorder %s144, %s145
      %p157 = scmp.eq.s32.totalorder %s24, 1
      %p158 = por %p156, %p157
      %p160 = scmp.ne.s32.totalorder %s145, %s159
      %p161 = scmp.eq.s32.totalorder %s24, 0
      %p162 = por %p160, %p161
      %s163 = ssub.s32 %s25, %s37
      %p164 = scmp.eq.s32.totalorder %s163, 0
      %s166 = sadd.s32 %s165, 1
      %s167 = scalar_select %p164, %s165, %s166
      %p170 = pneg %p164
      %p171 = scmp.eq.s32.totalorder %s18, 1
      %p172 = por %p170, %p171
      %p173 = scmp.ne.s32.totalorder %s165, %s168
      %p174 = scmp.eq.s32.totalorder %s18, 0
      %p175 = por %p173, %p174
      %p176 = scmp.ne.s32.totalorder %s165, %s168
      %p177 = scmp.eq.s32.totalorder %s23, 1
      %p178 = por %p176, %p177
      %p179 = scmp.ne.s32.totalorder %s168, %s169
      %p180 = scmp.eq.s32.totalorder %s23, 0
      %p181 = por %p179, %p180
      %p182 = scmp.ne.s32.totalorder %s168, %s169
      %p183 = scmp.eq.s32.totalorder %s24, 1
      %p184 = por %p182, %p183
      %p186 = scmp.ne.s32.totalorder %s169, %s185
      %p187 = scmp.eq.s32.totalorder %s24, 0
      %p188 = por %p186, %p187
      %p189 = scmp.le.s32.totalorder 1, %s18
      %p190 = scmp.lt.s32.totalorder %s18, 3
      %p191 = pnand %p189, %p190
      %p192 = pneg %p191
      // Predicated region
      $region9: #{tpu_custom_call.1} parent=5 // pred_check
        _
      $region10: #{tpu_custom_call.1} parent=5 // pred_check_branch
        %194 = sbr.rel (%p191) target = $region12
      $region11: #{tpu_custom_call.1} parent=5 // pred_region
        %s195 = ssub.s32 %s18, 1
        // Predicated region
        $region13: #{tpu_custom_call.1} parent=11 // pred_check
          %p196 = pneg %p82
        $region14: #{tpu_custom_call.1} parent=11 // pred_check_branch
          %198 = sbr.rel (%p196) target = $region16
        $region15: #{tpu_custom_call.1} parent=11 // pred_region
          %s200 = ssub.s32 2048, 2048
          %201 = vsyncadd [#allocation7], %s200
          %s202 = smul.addr %s28, 128
          %s203 = scalar_lea.hbm %s1, %s202
          %s204 = sshll.u32 [#allocation6], 4
          %s205 = int_to_ptr.vmem [resolvable:$true] %s204
          %210 = dma.hbm_to_vmem [thread:$0]  %s203, 2048, %s205, [#allocation7], 128, 128, 8
        $region16: #{tpu_custom_call.1} parent=11 // pred_fallthru
          _
        // Predicated region
        $region17: #{tpu_custom_call.1} parent=11 // pred_check
          %p211 = pneg %p108
        $region18: #{tpu_custom_call.1} parent=11 // pred_check_branch
          %213 = sbr.rel (%p211) target = $region20
        $region19: #{tpu_custom_call.1} parent=11 // pred_region
          %p214 = scmp.lt.s32.totalorder %s28, 0
          %s215 = scalar_select %p214, %s28, 0
          %s216 = scalar_lea.vmem %s2, %s215
        $region20: #{tpu_custom_call.1} parent=11 // pred_fallthru
          _
        // Predicated region
        $region21: #{tpu_custom_call.1} parent=11 // pred_check
          %p217 = pneg %p134
        $region22: #{tpu_custom_call.1} parent=11 // pred_check_branch
          %219 = sbr.rel (%p217) target = $region24
        $region23: #{tpu_custom_call.1} parent=11 // pred_region
          %s220 = smul.u32 16, %s28
          %s222 = ssub.s32 2048, 2048
          %223 = vsyncadd [#allocation7], %s222
          %s224 = smul.addr %s220, 128
          %s225 = scalar_lea.hbm %s3, %s224
          %s226 = sshll.u32 [#allocation8], 4
          %s227 = int_to_ptr.vmem [resolvable:$true] %s226
          %232 = dma.hbm_to_vmem [thread:$0]  %s225, 2048, %s227, [#allocation7], 128, 128, 8
        $region24: #{tpu_custom_call.1} parent=11 // pred_fallthru
          _
        // Predicated region
        $region25: #{tpu_custom_call.1} parent=11 // pred_check
          %p233 = pneg %p155
        $region26: #{tpu_custom_call.1} parent=11 // pred_check_branch
          %235 = sbr.rel (%p233) target = $region28
        $region27: #{tpu_custom_call.1} parent=11 // pred_region
          _
        $region28: #{tpu_custom_call.1} parent=11 // pred_fallthru
          _
      $region12: #{tpu_custom_call.1} parent=5 // pred_fallthru
        _
      %p236 = scmp.lt.s32.totalorder %s18, 2
      // Predicated region
      $region29: #{tpu_custom_call.1} parent=5 // pred_check
        %p237 = pneg %p236
      $region30: #{tpu_custom_call.1} parent=5 // pred_check_branch
        %239 = sbr.rel (%p237) target = $region32
      $region31: #{tpu_custom_call.1} parent=5 // pred_region
        // Predicated region
        $region33: #{tpu_custom_call.1} parent=31 // pred_check
          %p240 = pneg %p50
        $region34: #{tpu_custom_call.1} parent=31 // pred_check_branch
          %242 = sbr.rel (%p240) target = $region36
        $region35: #{tpu_custom_call.1} parent=31 // pred_region
          %s243 = sand.u32 %s40, 1
          %s244 = scalar_lea.sflag [#allocation4], %s243
          %s245 = sand.u32 %s40, 1
          %s246 = smul.addr %s245, 8
          %s247 = scalar_lea.vmem [#allocation3], %s246
          %s249 = ssub.s32 128, 128
          %250 = vsyncadd %s244, %s249
          %s251 = smul.addr %s25, 128
          %s252 = scalar_lea.hbm %s0, %s251
          %s254 = sshll.u32 %s247, 4
          %s255 = int_to_ptr.vmem [resolvable:$true] %s254
          %257 = dma.hbm_to_vmem [thread:$0]  %s252, 128, %s255, %s244
        $region36: #{tpu_custom_call.1} parent=31 // pred_fallthru
          _
      $region32: #{tpu_custom_call.1} parent=5 // pred_fallthru
        _
      %p258 = scmp.le.s32.totalorder 1, %s18
      %p259 = scmp.lt.s32.totalorder %s18, 3
      %p260 = pnand %p258, %p259
      %p261 = pneg %p260
      // Predicated region
      $region37: #{tpu_custom_call.1} parent=5 // pred_check
        _
      $region38: #{tpu_custom_call.1} parent=5 // pred_check_branch
        %263 = sbr.rel (%p260) target = $region40
      $region39: #{tpu_custom_call.1} parent=5 // pred_region
        %s264 = ssub.s32 %s18, 1
        %s265 = sand.u32 %s43, 1
        %s266 = scalar_lea.sflag [#allocation4], %s265
        %s267 = sand.u32 %s43, 1
        %s268 = smul.addr %s267, 8
        %s269 = scalar_lea.vmem [#allocation3], %s268
        // Predicated region
        $region41: #{tpu_custom_call.1} parent=39 // pred_check
          %p270 = pneg %p56
        $region42: #{tpu_custom_call.1} parent=39 // pred_check_branch
          %272 = sbr.rel (%p270) target = $region44
        $region43: #{tpu_custom_call.1} parent=39 // pred_region
          %273 = dma.done %s266, 128
        $region44: #{tpu_custom_call.1} parent=39 // pred_fallthru
          _
        // Predicated region
        $region45: #{tpu_custom_call.1} parent=39 // pred_check
          %p274 = pneg %p82
        $region46: #{tpu_custom_call.1} parent=39 // pred_check_branch
          %276 = sbr.rel (%p274) target = $region48
        $region47: #{tpu_custom_call.1} parent=39 // pred_region
          %277 = dma.done [#allocation7], 2048
        $region48: #{tpu_custom_call.1} parent=39 // pred_fallthru
          _
        // Predicated region
        $region49: #{tpu_custom_call.1} parent=39 // pred_check
          %p278 = pneg %p134
        $region50: #{tpu_custom_call.1} parent=39 // pred_check_branch
          %280 = sbr.rel (%p278) target = $region52
        $region51: #{tpu_custom_call.1} parent=39 // pred_region
          %281 = dma.done [#allocation7], 2048
        $region52: #{tpu_custom_call.1} parent=39 // pred_fallthru
          _
        %s282 = sand.u32 %s43, 1
        %s283 = scalar_lea.sflag [#allocation4], %s282
        %s284 = sand.u32 %s43, 1
        %s285 = smul.addr %s284, 8
        %s286 = scalar_lea.vmem [#allocation3], %s285
        %p287 = pneg %p56
        %p288 = pneg %p53
        %p289 = pneg %p82
        %p290 = pneg %p79
        %p291 = scmp.lt.s32.totalorder %s28, 0
        %s292 = scalar_select %p291, %s28, 0
        %s293 = scalar_lea.vmem %s2, %s292
        %p294 = pneg %p108
        %p295 = pneg %p105
        %p296 = pneg %p134
        %p297 = pneg %p131
        %p298 = pneg %p155
        %p299 = pneg %p152
        %p300 = pneg %p181
        %p301 = pneg %p178
        %s302 = sand.u32 %s168, 1
        %s303 = scalar_lea.sflag [#allocation5], %s302
        %s304 = sand.u32 %s168, 1
        %s305 = smul.addr %s304, 8
        %s306 = scalar_lea.vmem [#allocation9], %s305
        %p307 = scmp.lt.s32.totalorder %s28, 0
        %s308 = scalar_select %p307, %s28, 0
        %s309 = scalar_lea.vmem %s2, %s308
        %s310 = smul.u32 16, %s28
        %p312 = scmp.eq.s32.totalorder %s28, 0
        // Predicated region
        $region53: #{tpu_custom_call.1} parent=39 // pred_check
          %p313 = pneg %p312
        $region54: #{tpu_custom_call.1} parent=39 // pred_check_branch
          %315 = sbr.rel (%p313) target = $region56
        $region55: #{tpu_custom_call.1} parent=39 // pred_region
          %316 = vst [vmem:[#allocation2] sm:$0xff] 0.0
        $region56: #{tpu_custom_call.1} parent=39 // pred_fallthru
          _
        %v317 = vld [vmem:[%s269] sm:$0xff]
        %v318 = vpack.c.bf16 %v317, %v317
        %v319 = vld [vmem:[#allocation6] sm:$0xff]
        %v320 = vld [vmem:[#allocation6 + $0x8] sm:$0xff]
        %v321 = vld [vmem:[#allocation6 + $0x10] sm:$0xff]
        %v322 = vld [vmem:[#allocation6 + $0x18] sm:$0xff]
        %v323 = vld [vmem:[#allocation6 + $0x20] sm:$0xff]
        %v324 = vld [vmem:[#allocation6 + $0x28] sm:$0xff]
        %v325 = vld [vmem:[#allocation6 + $0x30] sm:$0xff]
        %v326 = vld [vmem:[#allocation6 + $0x38] sm:$0xff]
        %v327 = vld [vmem:[#allocation6 + $0x40] sm:$0xff]
        %v328 = vld [vmem:[#allocation6 + $0x48] sm:$0xff]
        %v329 = vld [vmem:[#allocation6 + $0x50] sm:$0xff]
        %v330 = vld [vmem:[#allocation6 + $0x58] sm:$0xff]
        %v331 = vld [vmem:[#allocation6 + $0x60] sm:$0xff]
        %v332 = vld [vmem:[#allocation6 + $0x68] sm:$0xff]
        %v333 = vld [vmem:[#allocation6 + $0x70] sm:$0xff]
        %v334 = vld [vmem:[#allocation6 + $0x78] sm:$0xff]
        %v335 = vpack.c.bf16 %v320, %v319
        %v336 = vpack.c.bf16 %v322, %v321
        %v337 = vpack.c.bf16 %v324, %v323
        %v338 = vpack.c.bf16 %v326, %v325
        %v339 = vpack.c.bf16 %v328, %v327
        %v340 = vpack.c.bf16 %v330, %v329
        %v341 = vpack.c.bf16 %v332, %v331
        %v342 = vpack.c.bf16 %v334, %v333
        %v343 = vld [vmem:[%s309] sm:$0x1]
        %v345 = vlaneseq
        %v346 = vshrl.u32 %v345, 7
        %v347 = vsub.s32 0, %v346
        %v348 = vrot.slane %v343, %v347
        %350 = vmatprep.subr.bf16.mxu0 0
        %351 = vmatpush1.bf16.msra.mxu0 %v342
        %352 = vmatprep.subr.bf16.mxu0 0
        %353 = vmatpush1.bf16.msra.mxu0 %v341
        %354 = vmatprep.subr.bf16.mxu0 0
        %355 = vmatpush1.bf16.msra.mxu0 %v340
        %356 = vmatprep.subr.bf16.mxu0 0
        %357 = vmatpush1.bf16.msra.mxu0 %v339
        %358 = vmatprep.subr.bf16.mxu0 0
        %359 = vmatpush1.bf16.msra.mxu0 %v338
        %360 = vmatprep.subr.bf16.mxu0 0
        %361 = vmatpush1.bf16.msra.mxu0 %v337
        %362 = vmatprep.subr.bf16.mxu0 0
        %363 = vmatpush1.bf16.msra.mxu0 %v336
        %364 = vmatprep.subr.bf16.mxu0 0
        %365 = vmatpush1.bf16.msra.mxu0 %v335
        %366 = vmatprep.subr.bf16.mxu0 0
        %367 = vmatpush2.bf16.msra.mxu0 0
        %368 = vmatprep.subr.bf16.mxu0 0
        %369 = vmatpush2.bf16.msra.mxu0 0
        %370 = vmatprep.subr.bf16.mxu0 0
        %371 = vmatpush2.bf16.msra.mxu0 0
        %372 = vmatprep.subr.bf16.mxu0 0
        %373 = vmatpush2.bf16.msra.mxu0 0
        %374 = vmatprep.subr.bf16.mxu0 0
        %375 = vmatpush2.bf16.msra.mxu0 0
        %376 = vmatprep.subr.bf16.mxu0 0
        %377 = vmatpush2.bf16.msra.mxu0 0
        %378 = vmatprep.subr.bf16.mxu0 0
        %379 = vmatpush2.bf16.msra.mxu0 0
        %380 = vmatprep.subr.bf16.mxu0 0
        %381 = vmatpush2.bf16.msra.mxu0 0
        %382 = vmatprep.mubr.bf16.mxu0 0
        %383 = vmatmul.mubr.bf16.gmra.mxu0 %v318
        %v384 = vpop.f32.mrf.mxu0
        %v385 = vadd.f32 %v348, %v384
        %v386 = vpop.f32.mrf.mxu0
        %v387 = vpop.f32.mrf.mxu0
        %v388 = vpop.f32.mrf.mxu0
        %389 = vdwg.mxu0
        %v390 = vmax.f32 %v385, 0.0
        %v391 = vpack.c.bf16 %v390, %v390
        %v392 = vld [vmem:[#allocation8] sm:$0xff]
        %v393 = vld [vmem:[#allocation8 + $0x8] sm:$0xff]
        %v394 = vld [vmem:[#allocation8 + $0x10] sm:$0xff]
        %v395 = vld [vmem:[#allocation8 + $0x18] sm:$0xff]
        %v396 = vld [vmem:[#allocation8 + $0x20] sm:$0xff]
        %v397 = vld [vmem:[#allocation8 + $0x28] sm:$0xff]
        %v398 = vld [vmem:[#allocation8 + $0x30] sm:$0xff]
        %v399 = vld [vmem:[#allocation8 + $0x38] sm:$0xff]
        %v400 = vld [vmem:[#allocation8 + $0x40] sm:$0xff]
        %v401 = vld [vmem:[#allocation8 + $0x48] sm:$0xff]
        %v402 = vld [vmem:[#allocation8 + $0x50] sm:$0xff]
        %v403 = vld [vmem:[#allocation8 + $0x58] sm:$0xff]
        %v404 = vld [vmem:[#allocation8 + $0x60] sm:$0xff]
        %v405 = vld [vmem:[#allocation8 + $0x68] sm:$0xff]
        %v406 = vld [vmem:[#allocation8 + $0x70] sm:$0xff]
        %v407 = vld [vmem:[#allocation8 + $0x78] sm:$0xff]
        %v408 = vpack.c.bf16 %v393, %v392
        %v409 = vpack.c.bf16 %v395, %v394
        %v410 = vpack.c.bf16 %v397, %v396
        %v411 = vpack.c.bf16 %v399, %v398
        %v412 = vpack.c.bf16 %v401, %v400
        %v413 = vpack.c.bf16 %v403, %v402
        %v414 = vpack.c.bf16 %v405, %v404
        %v415 = vpack.c.bf16 %v407, %v406
        %v416 = vld [vmem:[#allocation2] sm:$0xff]
        %417 = vmatprep.subr.bf16.mxu0 0
        %418 = vmatpush1.bf16.msra.mxu0 %v415
        %419 = vmatprep.subr.bf16.mxu0 0
        %420 = vmatpush1.bf16.msra.mxu0 %v414
        %421 = vmatprep.subr.bf16.mxu0 0
        %422 = vmatpush1.bf16.msra.mxu0 %v413
        %423 = vmatprep.subr.bf16.mxu0 0
        %424 = vmatpush1.bf16.msra.mxu0 %v412
        %425 = vmatprep.subr.bf16.mxu0 0
        %426 = vmatpush1.bf16.msra.mxu0 %v411
        %427 = vmatprep.subr.bf16.mxu0 0
        %428 = vmatpush1.bf16.msra.mxu0 %v410
        %429 = vmatprep.subr.bf16.mxu0 0
        %430 = vmatpush1.bf16.msra.mxu0 %v409
        %431 = vmatprep.subr.bf16.mxu0 0
        %432 = vmatpush1.bf16.msra.mxu0 %v408
        %433 = vmatprep.subr.bf16.mxu0 0
        %434 = vmatpush2.bf16.msra.mxu0 0
        %435 = vmatprep.subr.bf16.mxu0 0
        %436 = vmatpush2.bf16.msra.mxu0 0
        %437 = vmatprep.subr.bf16.mxu0 0
        %438 = vmatpush2.bf16.msra.mxu0 0
        %439 = vmatprep.subr.bf16.mxu0 0
        %440 = vmatpush2.bf16.msra.mxu0 0
        %441 = vmatprep.subr.bf16.mxu0 0
        %442 = vmatpush2.bf16.msra.mxu0 0
        %443 = vmatprep.subr.bf16.mxu0 0
        %444 = vmatpush2.bf16.msra.mxu0 0
        %445 = vmatprep.subr.bf16.mxu0 0
        %446 = vmatpush2.bf16.msra.mxu0 0
        %447 = vmatprep.subr.bf16.mxu0 0
        %448 = vmatpush2.bf16.msra.mxu0 0
        %449 = vmatprep.mubr.bf16.mxu0 0
        %450 = vmatmul.mubr.bf16.gmra.mxu0 %v391
        %v451 = vpop.f32.mrf.mxu0
        %v452 = vadd.f32 0.0, %v451
        %v453 = vpop.f32.mrf.mxu0
        %v454 = vpop.f32.mrf.mxu0
        %v455 = vpop.f32.mrf.mxu0
        %456 = vdwg.mxu0
        %v457 = vadd.f32 %v416, %v452
        %458 = vst [vmem:[#allocation2] sm:$0xff] %v457
        // Predicated region
        $region57: #{tpu_custom_call.1} parent=39 // pred_check
          %p459 = pneg %p312
        $region58: #{tpu_custom_call.1} parent=39 // pred_check_branch
          %461 = sbr.rel (%p459) target = $region60
        $region59: #{tpu_custom_call.1} parent=39 // pred_region
          %v462 = vld [vmem:[#allocation2] sm:$0xff]
          %v463 = vld [vmem:[%s4] sm:$0x1]
          %v465 = vlaneseq
          %v466 = vshrl.u32 %v465, 7
          %v467 = vsub.s32 0, %v466
          %v468 = vrot.slane %v463, %v467
          %v470 = vadd.f32 %v462, %v468
          %471 = vst [vmem:[%s306] sm:$0xff] %v470
        $region60: #{tpu_custom_call.1} parent=39 // pred_fallthru
          _
        %s472 = sand.u32 %s168, 1
        %s473 = scalar_lea.sflag [#allocation5], %s472
        %s474 = sand.u32 %s168, 1
        %s475 = smul.addr %s474, 8
        %s476 = scalar_lea.vmem [#allocation9], %s475
        // Predicated region
        $region61: #{tpu_custom_call.1} parent=39 // pred_check
          %p477 = pneg %p178
        $region62: #{tpu_custom_call.1} parent=39 // pred_check_branch
          %479 = sbr.rel (%p477) target = $region64
        $region63: #{tpu_custom_call.1} parent=39 // pred_region
          %s481 = ssub.s32 128, 128
          %482 = vsyncadd %s473, %s481
          %s483 = smul.addr %s27, 128
          %s484 = scalar_lea.hbm %s5, %s483
          %s486 = sshll.u32 %s476, 4
          %s487 = int_to_ptr.vmem [resolvable:$true] %s486
          %489 = dma.vmem_to_hbm [thread:$0]  %s487, 128, %s484, %s473
        $region64: #{tpu_custom_call.1} parent=39 // pred_fallthru
          _
      $region40: #{tpu_custom_call.1} parent=5 // pred_fallthru
        _
      %p490 = scmp.le.s32.totalorder 2, %s18
      // Predicated region
      $region65: #{tpu_custom_call.1} parent=5 // pred_check
        %p491 = pneg %p490
      $region66: #{tpu_custom_call.1} parent=5 // pred_check_branch
        %493 = sbr.rel (%p491) target = $region68
      $region67: #{tpu_custom_call.1} parent=5 // pred_region
        %s494 = ssub.s32 %s18, 2
        // Predicated region
        $region69: #{tpu_custom_call.1} parent=67 // pred_check
          %p495 = pneg %p184
        $region70: #{tpu_custom_call.1} parent=67 // pred_check_branch
          %497 = sbr.rel (%p495) target = $region72
        $region71: #{tpu_custom_call.1} parent=67 // pred_region
          %s498 = sand.u32 %s169, 1
          %s499 = scalar_lea.sflag [#allocation5], %s498
          %s500 = sand.u32 %s169, 1
          %s501 = smul.addr %s500, 8
          %s502 = scalar_lea.vmem [#allocation9], %s501
          %503 = dma.done %s499, 128
        $region72: #{tpu_custom_call.1} parent=67 // pred_fallthru
          _
      $region68: #{tpu_custom_call.1} parent=5 // pred_fallthru
        _
    $region6: #{tpu_custom_call.1} parent=1 // loop_footer
      %s22 = sadd.s32 1, %s18
    $region7: #{tpu_custom_call.1} parent=1 // loop_footer_branch
      %17 = sbr.rel target = $region3
    $region8: #{tpu_custom_call.1} parent=1 // loop_exit
      _
    %504 = vsyncpa [#allocation4], 1
    %s505 = scalar_lea.sflag [#allocation4], 1
    %506 = vsyncpa %s505, 1
    %507 = vsyncpa [#allocation7], 1
    %508 = vsyncpa [#allocation5], 1
    %s509 = scalar_lea.sflag [#allocation5], 1
    %510 = vsyncpa %s509, 1

</llo_original>
